<compile_context>
chip_gen: v6e
topology: v6e:2x2x1
jax: 0.10.0
libtpu: 0.0.40
codegen_flags: <defaults>
</compile_context>

<pallas_src>
import functools

import jax
import jax.numpy as jnp
from jax.experimental import pallas as pl
from jax.experimental.pallas import tpu as pltpu


def _dropout_kernel(x_ref, rnd_ref, o_ref, *, threshold_i32, scale):
    """keep iff rnd >= threshold (one int32 compare); survivors scaled 1/(1-p)."""
    x = x_ref[...]                                   # compute in x's own dtype
    keep = rnd_ref[...] >= jnp.int32(threshold_i32)  # single VPU compare per vreg
    scaled = x * jnp.asarray(scale, dtype=x.dtype)
    o_ref[...] = jnp.where(keep, scaled, jnp.zeros_like(scaled))


def dropout_pallas(x, key, *, p=0.1, training=True):
    """Equivalent of nn.Dropout(p)(x) in training mode (identity if eval)."""
    if not training or p == 0.0:
        return x

    orig_shape = x.shape
    H = orig_shape[-1]
    R = 1
    for d in orig_shape[:-1]:
        R *= d
    x2 = x.reshape(R, H)

    # Host-side uniform 32-bit randoms, bitcast to int32 so the in-kernel keep
    # test is a plain signed compare (uniform over int32 is order-preserving
    # after the 2^31 bias folded into the threshold below).
    bits = jax.random.bits(key, (R, H), dtype=jnp.uint32)
    rnd = jax.lax.bitcast_convert_type(bits, jnp.int32)

    threshold_i32 = int(round(p * (1 << 32))) - (1 << 31)  # signed threshold
    scale = 1.0 / (1.0 - p)

    out = pl.pallas_call(
        functools.partial(_dropout_kernel,
                          threshold_i32=threshold_i32, scale=scale),
        out_shape=jax.ShapeDtypeStruct((R, H), x.dtype),
        grid=(1,),
        in_specs=[pl.BlockSpec((R, H), lambda i: (0, 0)),   # x (lane-dense)
                  pl.BlockSpec((R, H), lambda i: (0, 0))],  # random bits
        out_specs=pl.BlockSpec((R, H), lambda i: (0, 0)),
        # Dropout is elementwise: let the output reuse x's buffer when donated.
        input_output_aliases={0: 0},
        compiler_params=pltpu.CompilerParams(
            dimension_semantics=("arbitrary",)),
    )(x2, rnd)
    return out.reshape(orig_shape)


class MPallas:
    """Mirrors the PyTorch module M: forward(x) = Dropout(p=0.1)(x)."""

    def __init__(self, p=0.1, key=None):
        self.p = p
        self._key = key if key is not None else jax.random.PRNGKey(0)

    def __call__(self, x, training=True):
        # Fresh dropout mask each forward call, like torch.nn.Dropout.
        self._key, sub = jax.random.split(self._key)
        return dropout_pallas(x, sub, p=self.p, training=training)


if __name__ == "__main__":
    key = jax.random.PRNGKey(0)
    # shape implied by the module's example input x188: (1, 384, 256)
    x = jax.random.normal(key, (1, 384, 256), dtype=jnp.float32)

    m = MPallas(p=0.1)
    y = m(x, training=True)
    y = jax.block_until_ready(y)

    # sanity checks: shape/dtype preserved, survivors exactly scaled by 1/(1-p),
    # and drop rate roughly p.
    assert y.shape == x.shape and y.dtype == x.dtype
    keep_mask = y != 0.0
    scale = jnp.float32(1.0 / 0.9)
    max_err = jnp.max(jnp.where(keep_mask, jnp.abs(y - x * scale), 0.0))
    assert float(max_err) < 1e-5, float(max_err)
    drop_rate = 1.0 - float(jnp.mean(keep_mask.astype(jnp.float32)))
    assert 0.05 < drop_rate < 0.15, drop_rate

    print("KERNEL_OK")
</pallas_src>

<mosaic_0001>
module attributes {stable_mosaic.version = 11 : i64} {
  func.func @_dropout_kernel(%arg0: i32, %arg1: memref<384x256xf32, #tpu.memory_space<vmem>>, %arg2: memref<384x256xi32, #tpu.memory_space<vmem>>, %arg3: memref<384x256xf32, #tpu.memory_space<vmem>>) attributes {dimension_semantics = [#tpu.dimension_semantics<arbitrary>], iteration_bounds = array<i64: 1>, scalar_prefetch = 0 : i64, scratch_operands = 0 : i64, tpu.core_type = #tpu.core_type<tc>, window_params = [{pipeline_mode = #tpu.pipeline_mode<synchronous>, transform_indices = @transform_0, window_bounds = array<i64: 384, 256>}, {pipeline_mode = #tpu.pipeline_mode<synchronous>, transform_indices = @transform_1, window_bounds = array<i64: 384, 256>}, {pipeline_mode = #tpu.pipeline_mode<synchronous>, transform_indices = @transform_2, window_bounds = array<i64: 384, 256>}]} {
    %c0 = arith.constant 0 : index
    %c0_0 = arith.constant 0 : index
    %0 = vector.load %arg1[%c0, %c0_0] : memref<384x256xf32, #tpu.memory_space<vmem>>, vector<384x256xf32>
    %c0_1 = arith.constant 0 : index
    %c0_2 = arith.constant 0 : index
    %1 = vector.load %arg2[%c0_1, %c0_2] : memref<384x256xi32, #tpu.memory_space<vmem>>, vector<384x256xi32>
    %c-1717986918_i32 = arith.constant -1717986918 : i32
    %2 = vector.broadcast %c-1717986918_i32 : i32 to vector<384x256xi32>
    %3 = arith.cmpi sge, %1, %2 : vector<384x256xi32>
    %cst = arith.constant 1.11111116 : f32
    %4 = vector.broadcast %cst : f32 to vector<384x256xf32>
    %5 = arith.mulf %0, %4 : vector<384x256xf32>
    %cst_3 = arith.constant 0.000000e+00 : f32
    %6 = vector.broadcast %cst_3 : f32 to vector<384x256xf32>
    %7 = arith.select %3, %5, %6 : vector<384x256xi1>, vector<384x256xf32>
    %c0_4 = arith.constant 0 : index
    %c0_5 = arith.constant 0 : index
    %8 = vector.load %arg3[%c0_4, %c0_5] : memref<384x256xf32, #tpu.memory_space<vmem>>, vector<384x256xf32>
    tpu.vector_store %arg3[%c0_4, %c0_5], %7 {strides = array<i32>} : memref<384x256xf32, #tpu.memory_space<vmem>>, vector<384x256xf32>,
    return
  }
  func.func @transform_0(%arg0: i32) -> (i32, i32) {
    %c0_i32 = arith.constant 0 : i32
    %c0_i32_0 = arith.constant 0 : i32
    %c0_i32_1 = arith.constant 0 : i32
    return %c0_i32, %c0_i32_0 : i32, i32
  }
  func.func @transform_1(%arg0: i32) -> (i32, i32) {
    %c0_i32 = arith.constant 0 : i32
    %c0_i32_0 = arith.constant 0 : i32
    %c0_i32_1 = arith.constant 0 : i32
    return %c0_i32, %c0_i32_0 : i32, i32
  }
  func.func @transform_2(%arg0: i32) -> (i32, i32) {
    %c0_i32 = arith.constant 0 : i32
    %c0_i32_0 = arith.constant 0 : i32
    %c0_i32_1 = arith.constant 0 : i32
    return %c0_i32, %c0_i32_0 : i32, i32
  }
}

</mosaic_0001>

<llo_original>
// kernel: tpu_custom_call.1
$region0: #{tpu_custom_call.1}
  #allocation0 [shape = 'u32[]', space=smem, size = 0x4, offset = 0x4, fixed_abs, tag = 'smem constant byte address 0x4 - core index']
  #allocation1 [shape = 'u32[144,128]{1,0:T(1,128)}', space=vmem, size = 0x12000, scoped, tag = 'internal scratch']
  %s0 = inlined_call_operand.hbm [shape: f32[384,256], index: 0, kind: input, shape index: {}, may-alias: {0,2}]
  %s1 = inlined_call_operand.vmem [shape: s32[384,256], index: 1, kind: input, shape index: {}]
  %s2 = inlined_call_operand.hbm [shape: f32[384,256], index: 2, kind: output, shape index: {}, may-alias: {0,2}]
  %s3 = sld [smem:[#allocation0]]
  $region22: #{tpu_custom_call.1} parent=0
    _
  %s5 = ssub.s32 1, %s3
  %s6 = scalar_select 0, %s5, %s3
  $region1: #{tpu_custom_call.1} parent=0
    #allocation2 [shape = 'u8[393216]{0}', space=vmem, size = 0x60000, scoped, tag = 'input window, operand 0, single buffered']
    #allocation3 [shape = 's32[1]{0}', space=sflag, size = 0x4, scoped, tag = 'scoped memory for tpu_custom_call.1']
    #allocation4 [shape = 's32[1]{0}', space=sflag, size = 0x4, scoped, tag = 'scoped memory for tpu_custom_call.1']
    #allocation5 [shape = 'u8[393216]{0}', space=vmem, size = 0x60000, scoped, tag = 'output window, operand 0, single buffered']
    %7 = vsyncpa [#allocation3], 0
    %8 = vsyncpa [#allocation4], 0
    // Predicated region
    $region2: #{tpu_custom_call.1} parent=1 // pred_check
      _
    $region3: #{tpu_custom_call.1} parent=1 // pred_check_branch
      %10 = sbr.rel (0) target = $region5
    $region4: #{tpu_custom_call.1} parent=1 // pred_region
      %s12 = ssub.s32 12288, 12288
      %13 = vsyncadd [#allocation3], %s12
      %s14 = sshll.u32 [#allocation2], 4
      %s15 = int_to_ptr.vmem [resolvable:$true] %s14
      %20 = dma.hbm_to_vmem [thread:$0]  %s0, 12288, %s15, [#allocation3], 256, 256, 16
    $region5: #{tpu_custom_call.1} parent=1 // pred_fallthru
      _
    // Predicated region
    $region6: #{tpu_custom_call.1} parent=1 // pred_check
      _
    $region7: #{tpu_custom_call.1} parent=1 // pred_check_branch
      %22 = sbr.rel (0) target = $region9
    $region8: #{tpu_custom_call.1} parent=1 // pred_region
      _
    $region9: #{tpu_custom_call.1} parent=1 // pred_fallthru
      _
    // Predicated region
    $region10: #{tpu_custom_call.1} parent=1 // pred_check
      _
    $region11: #{tpu_custom_call.1} parent=1 // pred_check_branch
      %24 = sbr.rel (0) target = $region13
    $region12: #{tpu_custom_call.1} parent=1 // pred_region
      %25 = dma.done [#allocation3], 12288
    $region13: #{tpu_custom_call.1} parent=1 // pred_fallthru
      _
    %v26 = vld [vmem:[#allocation2] sm:$0xff]
    %v27 = vld [vmem:[#allocation2 + $0x8] sm:$0xff]
    %v28 = vld [vmem:[#allocation2 + $0x10] sm:$0xff]
    %v29 = vld [vmem:[#allocation2 + $0x18] sm:$0xff]
    %v30 = vld [vmem:[#allocation2 + $0x20] sm:$0xff]
    %v31 = vld [vmem:[#allocation2 + $0x28] sm:$0xff]
    %v32 = vld [vmem:[#allocation2 + $0x30] sm:$0xff]
    %v33 = vld [vmem:[#allocation2 + $0x38] sm:$0xff]
    %v34 = vld [vmem:[#allocation2 + $0x40] sm:$0xff]
    %v35 = vld [vmem:[#allocation2 + $0x48] sm:$0xff]
    %v36 = vld [vmem:[#allocation2 + $0x50] sm:$0xff]
    %v37 = vld [vmem:[#allocation2 + $0x58] sm:$0xff]
    %v38 = vld [vmem:[#allocation2 + $0x60] sm:$0xff]
    %v39 = vld [vmem:[#allocation2 + $0x68] sm:$0xff]
    %v40 = vld [vmem:[#allocation2 + $0x70] sm:$0xff]
    %v41 = vld [vmem:[#allocation2 + $0x78] sm:$0xff]
    %v42 = vld [vmem:[#allocation2 + $0x80] sm:$0xff]
    %v43 = vld [vmem:[#allocation2 + $0x88] sm:$0xff]
    %v44 = vld [vmem:[#allocation2 + $0x90] sm:$0xff]
    %v45 = vld [vmem:[#allocation2 + $0x98] sm:$0xff]
    %v46 = vld [vmem:[#allocation2 + $0xa0] sm:$0xff]
    %v47 = vld [vmem:[#allocation2 + $0xa8] sm:$0xff]
    %v48 = vld [vmem:[#allocation2 + $0xb0] sm:$0xff]
    %v49 = vld [vmem:[#allocation2 + $0xb8] sm:$0xff]
    %v50 = vld [vmem:[#allocation2 + $0xc0] sm:$0xff]
    %v51 = vld [vmem:[#allocation2 + $0xc8] sm:$0xff]
    %v52 = vld [vmem:[#allocation2 + $0xd0] sm:$0xff]
    %v53 = vld [vmem:[#allocation2 + $0xd8] sm:$0xff]
    %v54 = vld [vmem:[#allocation2 + $0xe0] sm:$0xff]
    %v55 = vld [vmem:[#allocation2 + $0xe8] sm:$0xff]
    %v56 = vld [vmem:[#allocation2 + $0xf0] sm:$0xff]
    %v57 = vld [vmem:[#allocation2 + $0xf8] sm:$0xff]
    %v58 = vld [vmem:[#allocation2 + $0x100] sm:$0xff]
    %v59 = vld [vmem:[#allocation2 + $0x108] sm:$0xff]
    %v60 = vld [vmem:[#allocation2 + $0x110] sm:$0xff]
    %v61 = vld [vmem:[#allocation2 + $0x118] sm:$0xff]
    %v62 = vld [vmem:[#allocation2 + $0x120] sm:$0xff]
    %v63 = vld [vmem:[#allocation2 + $0x128] sm:$0xff]
    %v64 = vld [vmem:[#allocation2 + $0x130] sm:$0xff]
    %v65 = vld [vmem:[#allocation2 + $0x138] sm:$0xff]
    %v66 = vld [vmem:[#allocation2 + $0x140] sm:$0xff]
    %v67 = vld [vmem:[#allocation2 + $0x148] sm:$0xff]
    %v68 = vld [vmem:[#allocation2 + $0x150] sm:$0xff]
    %v69 = vld [vmem:[#allocation2 + $0x158] sm:$0xff]
    %v70 = vld [vmem:[#allocation2 + $0x160] sm:$0xff]
    %v71 = vld [vmem:[#allocation2 + $0x168] sm:$0xff]
    %v72 = vld [vmem:[#allocation2 + $0x170] sm:$0xff]
    %v73 = vld [vmem:[#allocation2 + $0x178] sm:$0xff]
    %v74 = vld [vmem:[#allocation2 + $0x180] sm:$0xff]
    %v75 = vld [vmem:[#allocation2 + $0x188] sm:$0xff]
    %v76 = vld [vmem:[#allocation2 + $0x190] sm:$0xff]
    %v77 = vld [vmem:[#allocation2 + $0x198] sm:$0xff]
    %v78 = vld [vmem:[#allocation2 + $0x1a0] sm:$0xff]
    %v79 = vld [vmem:[#allocation2 + $0x1a8] sm:$0xff]
    %v80 = vld [vmem:[#allocation2 + $0x1b0] sm:$0xff]
    %v81 = vld [vmem:[#allocation2 + $0x1b8] sm:$0xff]
    %v82 = vld [vmem:[#allocation2 + $0x1c0] sm:$0xff]
    %v83 = vld [vmem:[#allocation2 + $0x1c8] sm:$0xff]
    %v84 = vld [vmem:[#allocation2 + $0x1d0] sm:$0xff]
    %v85 = vld [vmem:[#allocation2 + $0x1d8] sm:$0xff]
    %v86 = vld [vmem:[#allocation2 + $0x1e0] sm:$0xff]
    %v87 = vld [vmem:[#allocation2 + $0x1e8] sm:$0xff]
    %v88 = vld [vmem:[#allocation2 + $0x1f0] sm:$0xff]
    %v89 = vld [vmem:[#allocation2 + $0x1f8] sm:$0xff]
    %v90 = vld [vmem:[#allocation2 + $0x200] sm:$0xff]
    %v91 = vld [vmem:[#allocation2 + $0x208] sm:$0xff]
    %v92 = vld [vmem:[#allocation2 + $0x210] sm:$0xff]
    %v93 = vld [vmem:[#allocation2 + $0x218] sm:$0xff]
    %v94 = vld [vmem:[#allocation2 + $0x220] sm:$0xff]
    %v95 = vld [vmem:[#allocation2 + $0x228] sm:$0xff]
    %v96 = vld [vmem:[#allocation2 + $0x230] sm:$0xff]
    %v97 = vld [vmem:[#allocation2 + $0x238] sm:$0xff]
    %v98 = vld [vmem:[#allocation2 + $0x240] sm:$0xff]
    %v99 = vld [vmem:[#allocation2 + $0x248] sm:$0xff]
    %v100 = vld [vmem:[#allocation2 + $0x250] sm:$0xff]
    %v101 = vld [vmem:[#allocation2 + $0x258] sm:$0xff]
    %v102 = vld [vmem:[#allocation2 + $0x260] sm:$0xff]
    %v103 = vld [vmem:[#allocation2 + $0x268] sm:$0xff]
    %v104 = vld [vmem:[#allocation2 + $0x270] sm:$0xff]
    %v105 = vld [vmem:[#allocation2 + $0x278] sm:$0xff]
    %v106 = vld [vmem:[#allocation2 + $0x280] sm:$0xff]
    %v107 = vld [vmem:[#allocation2 + $0x288] sm:$0xff]
    %v108 = vld [vmem:[#allocation2 + $0x290] sm:$0xff]
    %v109 = vld [vmem:[#allocation2 + $0x298] sm:$0xff]
    %v110 = vld [vmem:[#allocation2 + $0x2a0] sm:$0xff]
    %v111 = vld [vmem:[#allocation2 + $0x2a8] sm:$0xff]
    %v112 = vld [vmem:[#allocation2 + $0x2b0] sm:$0xff]
    %v113 = vld [vmem:[#allocation2 + $0x2b8] sm:$0xff]
    %v114 = vld [vmem:[#allocation2 + $0x2c0] sm:$0xff]
    %v115 = vld [vmem:[#allocation2 + $0x2c8] sm:$0xff]
    %v116 = vld [vmem:[#allocation2 + $0x2d0] sm:$0xff]
    %v117 = vld [vmem:[#allocation2 + $0x2d8] sm:$0xff]
    %v118 = vld [vmem:[#allocation2 + $0x2e0] sm:$0xff]
    %v119 = vld [vmem:[#allocation2 + $0x2e8] sm:$0xff]
    %v120 = vld [vmem:[#allocation2 + $0x2f0] sm:$0xff]
    %v121 = vld [vmem:[#allocation2 + $0x2f8] sm:$0xff]
    %v122 = vld [vmem:[%s1] sm:$0xff]
    %v123 = vld [vmem:[%s1 + $0x8] sm:$0xff]
    %v124 = vld [vmem:[%s1 + $0x10] sm:$0xff]
    %v125 = vld [vmem:[%s1 + $0x18] sm:$0xff]
    %v126 = vld [vmem:[%s1 + $0x20] sm:$0xff]
    %v127 = vld [vmem:[%s1 + $0x28] sm:$0xff]
    %v128 = vld [vmem:[%s1 + $0x30] sm:$0xff]
    %v129 = vld [vmem:[%s1 + $0x38] sm:$0xff]
    %v130 = vld [vmem:[%s1 + $0x40] sm:$0xff]
    %v131 = vld [vmem:[%s1 + $0x48] sm:$0xff]
    %v132 = vld [vmem:[%s1 + $0x50] sm:$0xff]
    %v133 = vld [vmem:[%s1 + $0x58] sm:$0xff]
    %v134 = vld [vmem:[%s1 + $0x60] sm:$0xff]
    %v135 = vld [vmem:[%s1 + $0x68] sm:$0xff]
    %v136 = vld [vmem:[%s1 + $0x70] sm:$0xff]
    %v137 = vld [vmem:[%s1 + $0x78] sm:$0xff]
    %v138 = vld [vmem:[%s1 + $0x80] sm:$0xff]
    %v139 = vld [vmem:[%s1 + $0x88] sm:$0xff]
    %v140 = vld [vmem:[%s1 + $0x90] sm:$0xff]
    %v141 = vld [vmem:[%s1 + $0x98] sm:$0xff]
    %v142 = vld [vmem:[%s1 + $0xa0] sm:$0xff]
    %v143 = vld [vmem:[%s1 + $0xa8] sm:$0xff]
    %v144 = vld [vmem:[%s1 + $0xb0] sm:$0xff]
    %v145 = vld [vmem:[%s1 + $0xb8] sm:$0xff]
    %v146 = vld [vmem:[%s1 + $0xc0] sm:$0xff]
    %v147 = vld [vmem:[%s1 + $0xc8] sm:$0xff]
    %v148 = vld [vmem:[%s1 + $0xd0] sm:$0xff]
    %v149 = vld [vmem:[%s1 + $0xd8] sm:$0xff]
    %v150 = vld [vmem:[%s1 + $0xe0] sm:$0xff]
    %v151 = vld [vmem:[%s1 + $0xe8] sm:$0xff]
    %v152 = vld [vmem:[%s1 + $0xf0] sm:$0xff]
    %v153 = vld [vmem:[%s1 + $0xf8] sm:$0xff]
    %v154 = vld [vmem:[%s1 + $0x100] sm:$0xff]
    %v155 = vld [vmem:[%s1 + $0x108] sm:$0xff]
    %v156 = vld [vmem:[%s1 + $0x110] sm:$0xff]
    %v157 = vld [vmem:[%s1 + $0x118] sm:$0xff]
    %v158 = vld [vmem:[%s1 + $0x120] sm:$0xff]
    %v159 = vld [vmem:[%s1 + $0x128] sm:$0xff]
    %v160 = vld [vmem:[%s1 + $0x130] sm:$0xff]
    %v161 = vld [vmem:[%s1 + $0x138] sm:$0xff]
    %v162 = vld [vmem:[%s1 + $0x140] sm:$0xff]
    %v163 = vld [vmem:[%s1 + $0x148] sm:$0xff]
    %v164 = vld [vmem:[%s1 + $0x150] sm:$0xff]
    %v165 = vld [vmem:[%s1 + $0x158] sm:$0xff]
    %v166 = vld [vmem:[%s1 + $0x160] sm:$0xff]
    %v167 = vld [vmem:[%s1 + $0x168] sm:$0xff]
    %v168 = vld [vmem:[%s1 + $0x170] sm:$0xff]
    %v169 = vld [vmem:[%s1 + $0x178] sm:$0xff]
    %v170 = vld [vmem:[%s1 + $0x180] sm:$0xff]
    %v171 = vld [vmem:[%s1 + $0x188] sm:$0xff]
    %v172 = vld [vmem:[%s1 + $0x190] sm:$0xff]
    %v173 = vld [vmem:[%s1 + $0x198] sm:$0xff]
    %v174 = vld [vmem:[%s1 + $0x1a0] sm:$0xff]
    %v175 = vld [vmem:[%s1 + $0x1a8] sm:$0xff]
    %v176 = vld [vmem:[%s1 + $0x1b0] sm:$0xff]
    %v177 = vld [vmem:[%s1 + $0x1b8] sm:$0xff]
    %v178 = vld [vmem:[%s1 + $0x1c0] sm:$0xff]
    %v179 = vld [vmem:[%s1 + $0x1c8] sm:$0xff]
    %v180 = vld [vmem:[%s1 + $0x1d0] sm:$0xff]
    %v181 = vld [vmem:[%s1 + $0x1d8] sm:$0xff]
    %v182 = vld [vmem:[%s1 + $0x1e0] sm:$0xff]
    %v183 = vld [vmem:[%s1 + $0x1e8] sm:$0xff]
    %v184 = vld [vmem:[%s1 + $0x1f0] sm:$0xff]
    %v185 = vld [vmem:[%s1 + $0x1f8] sm:$0xff]
    %v186 = vld [vmem:[%s1 + $0x200] sm:$0xff]
    %v187 = vld [vmem:[%s1 + $0x208] sm:$0xff]
    %v188 = vld [vmem:[%s1 + $0x210] sm:$0xff]
    %v189 = vld [vmem:[%s1 + $0x218] sm:$0xff]
    %v190 = vld [vmem:[%s1 + $0x220] sm:$0xff]
    %v191 = vld [vmem:[%s1 + $0x228] sm:$0xff]
    %v192 = vld [vmem:[%s1 + $0x230] sm:$0xff]
    %v193 = vld [vmem:[%s1 + $0x238] sm:$0xff]
    %v194 = vld [vmem:[%s1 + $0x240] sm:$0xff]
    %v195 = vld [vmem:[%s1 + $0x248] sm:$0xff]
    %v196 = vld [vmem:[%s1 + $0x250] sm:$0xff]
    %v197 = vld [vmem:[%s1 + $0x258] sm:$0xff]
    %v198 = vld [vmem:[%s1 + $0x260] sm:$0xff]
    %v199 = vld [vmem:[%s1 + $0x268] sm:$0xff]
    %v200 = vld [vmem:[%s1 + $0x270] sm:$0xff]
    %v201 = vld [vmem:[%s1 + $0x278] sm:$0xff]
    %v202 = vld [vmem:[%s1 + $0x280] sm:$0xff]
    %v203 = vld [vmem:[%s1 + $0x288] sm:$0xff]
    %v204 = vld [vmem:[%s1 + $0x290] sm:$0xff]
    %v205 = vld [vmem:[%s1 + $0x298] sm:$0xff]
    %v206 = vld [vmem:[%s1 + $0x2a0] sm:$0xff]
    %v207 = vld [vmem:[%s1 + $0x2a8] sm:$0xff]
    %v208 = vld [vmem:[%s1 + $0x2b0] sm:$0xff]
    %v209 = vld [vmem:[%s1 + $0x2b8] sm:$0xff]
    %v210 = vld [vmem:[%s1 + $0x2c0] sm:$0xff]
    %v211 = vld [vmem:[%s1 + $0x2c8] sm:$0xff]
    %v212 = vld [vmem:[%s1 + $0x2d0] sm:$0xff]
    %v213 = vld [vmem:[%s1 + $0x2d8] sm:$0xff]
    %v214 = vld [vmem:[%s1 + $0x2e0] sm:$0xff]
    %v215 = vld [vmem:[%s1 + $0x2e8] sm:$0xff]
    %v216 = vld [vmem:[%s1 + $0x2f0] sm:$0xff]
    %v217 = vld [vmem:[%s1 + $0x2f8] sm:$0xff]
    %vm218 = vcmp.ge.s32.totalorder %v122, 2576980378
    %vm219 = vcmp.ge.s32.totalorder %v123, 2576980378
    %vm220 = vcmp.ge.s32.totalorder %v124, 2576980378
    %vm221 = vcmp.ge.s32.totalorder %v125, 2576980378
    %vm222 = vcmp.ge.s32.totalorder %v126, 2576980378
    %vm223 = vcmp.ge.s32.totalorder %v127, 2576980378
    %vm224 = vcmp.ge.s32.totalorder %v128, 2576980378
    %vm225 = vcmp.ge.s32.totalorder %v129, 2576980378
    %vm226 = vcmp.ge.s32.totalorder %v130, 2576980378
    %vm227 = vcmp.ge.s32.totalorder %v131, 2576980378
    %vm228 = vcmp.ge.s32.totalorder %v132, 2576980378
    %vm229 = vcmp.ge.s32.totalorder %v133, 2576980378
    %vm230 = vcmp.ge.s32.totalorder %v134, 2576980378
    %vm231 = vcmp.ge.s32.totalorder %v135, 2576980378
    %vm232 = vcmp.ge.s32.totalorder %v136, 2576980378
    %vm233 = vcmp.ge.s32.totalorder %v137, 2576980378
    %vm234 = vcmp.ge.s32.totalorder %v138, 2576980378
    %vm235 = vcmp.ge.s32.totalorder %v139, 2576980378
    %vm236 = vcmp.ge.s32.totalorder %v140, 2576980378
    %vm237 = vcmp.ge.s32.totalorder %v141, 2576980378
    %vm238 = vcmp.ge.s32.totalorder %v142, 2576980378
    %vm239 = vcmp.ge.s32.totalorder %v143, 2576980378
    %vm240 = vcmp.ge.s32.totalorder %v144, 2576980378
    %vm241 = vcmp.ge.s32.totalorder %v145, 2576980378
    %vm242 = vcmp.ge.s32.totalorder %v146, 2576980378
    %vm243 = vcmp.ge.s32.totalorder %v147, 2576980378
    %vm244 = vcmp.ge.s32.totalorder %v148, 2576980378
    %vm245 = vcmp.ge.s32.totalorder %v149, 2576980378
    %vm246 = vcmp.ge.s32.totalorder %v150, 2576980378
    %vm247 = vcmp.ge.s32.totalorder %v151, 2576980378
    %vm248 = vcmp.ge.s32.totalorder %v152, 2576980378
    %vm249 = vcmp.ge.s32.totalorder %v153, 2576980378
    %vm250 = vcmp.ge.s32.totalorder %v154, 2576980378
    %vm251 = vcmp.ge.s32.totalorder %v155, 2576980378
    %vm252 = vcmp.ge.s32.totalorder %v156, 2576980378
    %vm253 = vcmp.ge.s32.totalorder %v157, 2576980378
    %vm254 = vcmp.ge.s32.totalorder %v158, 2576980378
    %vm255 = vcmp.ge.s32.totalorder %v159, 2576980378
    %vm256 = vcmp.ge.s32.totalorder %v160, 2576980378
    %vm257 = vcmp.ge.s32.totalorder %v161, 2576980378
    %vm258 = vcmp.ge.s32.totalorder %v162, 2576980378
    %vm259 = vcmp.ge.s32.totalorder %v163, 2576980378
    %vm260 = vcmp.ge.s32.totalorder %v164, 2576980378
    %vm261 = vcmp.ge.s32.totalorder %v165, 2576980378
    %vm262 = vcmp.ge.s32.totalorder %v166, 2576980378
    %vm263 = vcmp.ge.s32.totalorder %v167, 2576980378
    %vm264 = vcmp.ge.s32.totalorder %v168, 2576980378
    %vm265 = vcmp.ge.s32.totalorder %v169, 2576980378
    %vm266 = vcmp.ge.s32.totalorder %v170, 2576980378
    %vm267 = vcmp.ge.s32.totalorder %v171, 2576980378
    %vm268 = vcmp.ge.s32.totalorder %v172, 2576980378
    %vm269 = vcmp.ge.s32.totalorder %v173, 2576980378
    %vm270 = vcmp.ge.s32.totalorder %v174, 2576980378
    %vm271 = vcmp.ge.s32.totalorder %v175, 2576980378
    %vm272 = vcmp.ge.s32.totalorder %v176, 2576980378
    %vm273 = vcmp.ge.s32.totalorder %v177, 2576980378
    %vm274 = vcmp.ge.s32.totalorder %v178, 2576980378
    %vm275 = vcmp.ge.s32.totalorder %v179, 2576980378
    %vm276 = vcmp.ge.s32.totalorder %v180, 2576980378
    %vm277 = vcmp.ge.s32.totalorder %v181, 2576980378
    %vm278 = vcmp.ge.s32.totalorder %v182, 2576980378
    %vm279 = vcmp.ge.s32.totalorder %v183, 2576980378
    %vm280 = vcmp.ge.s32.totalorder %v184, 2576980378
    %vm281 = vcmp.ge.s32.totalorder %v185, 2576980378
    %vm282 = vcmp.ge.s32.totalorder %v186, 2576980378
    %vm283 = vcmp.ge.s32.totalorder %v187, 2576980378
    %vm284 = vcmp.ge.s32.totalorder %v188, 2576980378
    %vm285 = vcmp.ge.s32.totalorder %v189, 2576980378
    %vm286 = vcmp.ge.s32.totalorder %v190, 2576980378
    %vm287 = vcmp.ge.s32.totalorder %v191, 2576980378
    %vm288 = vcmp.ge.s32.totalorder %v192, 2576980378
    %vm289 = vcmp.ge.s32.totalorder %v193, 2576980378
    %vm290 = vcmp.ge.s32.totalorder %v194, 2576980378
    %vm291 = vcmp.ge.s32.totalorder %v195, 2576980378
    %vm292 = vcmp.ge.s32.totalorder %v196, 2576980378
    %vm293 = vcmp.ge.s32.totalorder %v197, 2576980378
    %vm294 = vcmp.ge.s32.totalorder %v198, 2576980378
    %vm295 = vcmp.ge.s32.totalorder %v199, 2576980378
    %vm296 = vcmp.ge.s32.totalorder %v200, 2576980378
    %vm297 = vcmp.ge.s32.totalorder %v201, 2576980378
    %vm298 = vcmp.ge.s32.totalorder %v202, 2576980378
    %vm299 = vcmp.ge.s32.totalorder %v203, 2576980378
    %vm300 = vcmp.ge.s32.totalorder %v204, 2576980378
    %vm301 = vcmp.ge.s32.totalorder %v205, 2576980378
    %vm302 = vcmp.ge.s32.totalorder %v206, 2576980378
    %vm303 = vcmp.ge.s32.totalorder %v207, 2576980378
    %vm304 = vcmp.ge.s32.totalorder %v208, 2576980378
    %vm305 = vcmp.ge.s32.totalorder %v209, 2576980378
    %vm306 = vcmp.ge.s32.totalorder %v210, 2576980378
    %vm307 = vcmp.ge.s32.totalorder %v211, 2576980378
    %vm308 = vcmp.ge.s32.totalorder %v212, 2576980378
    %vm309 = vcmp.ge.s32.totalorder %v213, 2576980378
    %vm310 = vcmp.ge.s32.totalorder %v214, 2576980378
    %vm311 = vcmp.ge.s32.totalorder %v215, 2576980378
    %vm312 = vcmp.ge.s32.totalorder %v216, 2576980378
    %vm313 = vcmp.ge.s32.totalorder %v217, 2576980378
    %v314 = vmul.f32 %v26, 1.1111112
    %v315 = vmul.f32 %v27, 1.1111112
    %v316 = vmul.f32 %v28, 1.1111112
    %v317 = vmul.f32 %v29, 1.1111112
    %v318 = vmul.f32 %v30, 1.1111112
    %v319 = vmul.f32 %v31, 1.1111112
    %v320 = vmul.f32 %v32, 1.1111112
    %v321 = vmul.f32 %v33, 1.1111112
    %v322 = vmul.f32 %v34, 1.1111112
    %v323 = vmul.f32 %v35, 1.1111112
    %v324 = vmul.f32 %v36, 1.1111112
    %v325 = vmul.f32 %v37, 1.1111112
    %v326 = vmul.f32 %v38, 1.1111112
    %v327 = vmul.f32 %v39, 1.1111112
    %v328 = vmul.f32 %v40, 1.1111112
    %v329 = vmul.f32 %v41, 1.1111112
    %v330 = vmul.f32 %v42, 1.1111112
    %v331 = vmul.f32 %v43, 1.1111112
    %v332 = vmul.f32 %v44, 1.1111112
    %v333 = vmul.f32 %v45, 1.1111112
    %v334 = vmul.f32 %v46, 1.1111112
    %v335 = vmul.f32 %v47, 1.1111112
    %v336 = vmul.f32 %v48, 1.1111112
    %v337 = vmul.f32 %v49, 1.1111112
    %v338 = vmul.f32 %v50, 1.1111112
    %v339 = vmul.f32 %v51, 1.1111112
    %v340 = vmul.f32 %v52, 1.1111112
    %v341 = vmul.f32 %v53, 1.1111112
    %v342 = vmul.f32 %v54, 1.1111112
    %v343 = vmul.f32 %v55, 1.1111112
    %v344 = vmul.f32 %v56, 1.1111112
    %v345 = vmul.f32 %v57, 1.1111112
    %v346 = vmul.f32 %v58, 1.1111112
    %v347 = vmul.f32 %v59, 1.1111112
    %v348 = vmul.f32 %v60, 1.1111112
    %v349 = vmul.f32 %v61, 1.1111112
    %v350 = vmul.f32 %v62, 1.1111112
    %v351 = vmul.f32 %v63, 1.1111112
    %v352 = vmul.f32 %v64, 1.1111112
    %v353 = vmul.f32 %v65, 1.1111112
    %v354 = vmul.f32 %v66, 1.1111112
    %v355 = vmul.f32 %v67, 1.1111112
    %v356 = vmul.f32 %v68, 1.1111112
    %v357 = vmul.f32 %v69, 1.1111112
    %v358 = vmul.f32 %v70, 1.1111112
    %v359 = vmul.f32 %v71, 1.1111112
    %v360 = vmul.f32 %v72, 1.1111112
    %v361 = vmul.f32 %v73, 1.1111112
    %v362 = vmul.f32 %v74, 1.1111112
    %v363 = vmul.f32 %v75, 1.1111112
    %v364 = vmul.f32 %v76, 1.1111112
    %v365 = vmul.f32 %v77, 1.1111112
    %v366 = vmul.f32 %v78, 1.1111112
    %v367 = vmul.f32 %v79, 1.1111112
    %v368 = vmul.f32 %v80, 1.1111112
    %v369 = vmul.f32 %v81, 1.1111112
    %v370 = vmul.f32 %v82, 1.1111112
    %v371 = vmul.f32 %v83, 1.1111112
    %v372 = vmul.f32 %v84, 1.1111112
    %v373 = vmul.f32 %v85, 1.1111112
    %v374 = vmul.f32 %v86, 1.1111112
    %v375 = vmul.f32 %v87, 1.1111112
    %v376 = vmul.f32 %v88, 1.1111112
    %v377 = vmul.f32 %v89, 1.1111112
    %v378 = vmul.f32 %v90, 1.1111112
    %v379 = vmul.f32 %v91, 1.1111112
    %v380 = vmul.f32 %v92, 1.1111112
    %v381 = vmul.f32 %v93, 1.1111112
    %v382 = vmul.f32 %v94, 1.1111112
    %v383 = vmul.f32 %v95, 1.1111112
    %v384 = vmul.f32 %v96, 1.1111112
    %v385 = vmul.f32 %v97, 1.1111112
    %v386 = vmul.f32 %v98, 1.1111112
    %v387 = vmul.f32 %v99, 1.1111112
    %v388 = vmul.f32 %v100, 1.1111112
    %v389 = vmul.f32 %v101, 1.1111112
    %v390 = vmul.f32 %v102, 1.1111112
    %v391 = vmul.f32 %v103, 1.1111112
    %v392 = vmul.f32 %v104, 1.1111112
    %v393 = vmul.f32 %v105, 1.1111112
    %v394 = vmul.f32 %v106, 1.1111112
    %v395 = vmul.f32 %v107, 1.1111112
    %v396 = vmul.f32 %v108, 1.1111112
    %v397 = vmul.f32 %v109, 1.1111112
    %v398 = vmul.f32 %v110, 1.1111112
    %v399 = vmul.f32 %v111, 1.1111112
    %v400 = vmul.f32 %v112, 1.1111112
    %v401 = vmul.f32 %v113, 1.1111112
    %v402 = vmul.f32 %v114, 1.1111112
    %v403 = vmul.f32 %v115, 1.1111112
    %v404 = vmul.f32 %v116, 1.1111112
    %v405 = vmul.f32 %v117, 1.1111112
    %v406 = vmul.f32 %v118, 1.1111112
    %v407 = vmul.f32 %v119, 1.1111112
    %v408 = vmul.f32 %v120, 1.1111112
    %v409 = vmul.f32 %v121, 1.1111112
    %v410 = vsel %vm218, %v314, 0.0
    %v411 = vsel %vm219, %v315, 0.0
    %v412 = vsel %vm220, %v316, 0.0
    %v413 = vsel %vm221, %v317, 0.0
    %v414 = vsel %vm222, %v318, 0.0
    %v415 = vsel %vm223, %v319, 0.0
    %v416 = vsel %vm224, %v320, 0.0
    %v417 = vsel %vm225, %v321, 0.0
    %v418 = vsel %vm226, %v322, 0.0
    %v419 = vsel %vm227, %v323, 0.0
    %v420 = vsel %vm228, %v324, 0.0
    %v421 = vsel %vm229, %v325, 0.0
    %v422 = vsel %vm230, %v326, 0.0
    %v423 = vsel %vm231, %v327, 0.0
    %v424 = vsel %vm232, %v328, 0.0
    %v425 = vsel %vm233, %v329, 0.0
    %v426 = vsel %vm234, %v330, 0.0
    %v427 = vsel %vm235, %v331, 0.0
    %v428 = vsel %vm236, %v332, 0.0
    %v429 = vsel %vm237, %v333, 0.0
    %v430 = vsel %vm238, %v334, 0.0
    %v431 = vsel %vm239, %v335, 0.0
    %v432 = vsel %vm240, %v336, 0.0
    %v433 = vsel %vm241, %v337, 0.0
    %v434 = vsel %vm242, %v338, 0.0
    %v435 = vsel %vm243, %v339, 0.0
    %v436 = vsel %vm244, %v340, 0.0
    %v437 = vsel %vm245, %v341, 0.0
    %v438 = vsel %vm246, %v342, 0.0
    %v439 = vsel %vm247, %v343, 0.0
    %v440 = vsel %vm248, %v344, 0.0
    %v441 = vsel %vm249, %v345, 0.0
    %v442 = vsel %vm250, %v346, 0.0
    %v443 = vsel %vm251, %v347, 0.0
    %v444 = vsel %vm252, %v348, 0.0
    %v445 = vsel %vm253, %v349, 0.0
    %v446 = vsel %vm254, %v350, 0.0
    %v447 = vsel %vm255, %v351, 0.0
    %v448 = vsel %vm256, %v352, 0.0
    %v449 = vsel %vm257, %v353, 0.0
    %v450 = vsel %vm258, %v354, 0.0
    %v451 = vsel %vm259, %v355, 0.0
    %v452 = vsel %vm260, %v356, 0.0
    %v453 = vsel %vm261, %v357, 0.0
    %v454 = vsel %vm262, %v358, 0.0
    %v455 = vsel %vm263, %v359, 0.0
    %v456 = vsel %vm264, %v360, 0.0
    %v457 = vsel %vm265, %v361, 0.0
    %v458 = vsel %vm266, %v362, 0.0
    %v459 = vsel %vm267, %v363, 0.0
    %v460 = vsel %vm268, %v364, 0.0
    %v461 = vsel %vm269, %v365, 0.0
    %v462 = vsel %vm270, %v366, 0.0
    %v463 = vsel %vm271, %v367, 0.0
    %v464 = vsel %vm272, %v368, 0.0
    %v465 = vsel %vm273, %v369, 0.0
    %v466 = vsel %vm274, %v370, 0.0
    %v467 = vsel %vm275, %v371, 0.0
    %v468 = vsel %vm276, %v372, 0.0
    %v469 = vsel %vm277, %v373, 0.0
    %v470 = vsel %vm278, %v374, 0.0
    %v471 = vsel %vm279, %v375, 0.0
    %v472 = vsel %vm280, %v376, 0.0
    %v473 = vsel %vm281, %v377, 0.0
    %v474 = vsel %vm282, %v378, 0.0
    %v475 = vsel %vm283, %v379, 0.0
    %v476 = vsel %vm284, %v380, 0.0
    %v477 = vsel %vm285, %v381, 0.0
    %v478 = vsel %vm286, %v382, 0.0
    %v479 = vsel %vm287, %v383, 0.0
    %v480 = vsel %vm288, %v384, 0.0
    %v481 = vsel %vm289, %v385, 0.0
    %v482 = vsel %vm290, %v386, 0.0
    %v483 = vsel %vm291, %v387, 0.0
    %v484 = vsel %vm292, %v388, 0.0
    %v485 = vsel %vm293, %v389, 0.0
    %v486 = vsel %vm294, %v390, 0.0
    %v487 = vsel %vm295, %v391, 0.0
    %v488 = vsel %vm296, %v392, 0.0
    %v489 = vsel %vm297, %v393, 0.0
    %v490 = vsel %vm298, %v394, 0.0
    %v491 = vsel %vm299, %v395, 0.0
    %v492 = vsel %vm300, %v396, 0.0
    %v493 = vsel %vm301, %v397, 0.0
    %v494 = vsel %vm302, %v398, 0.0
    %v495 = vsel %vm303, %v399, 0.0
    %v496 = vsel %vm304, %v400, 0.0
    %v497 = vsel %vm305, %v401, 0.0
    %v498 = vsel %vm306, %v402, 0.0
    %v499 = vsel %vm307, %v403, 0.0
    %v500 = vsel %vm308, %v404, 0.0
    %v501 = vsel %vm309, %v405, 0.0
    %v502 = vsel %vm310, %v406, 0.0
    %v503 = vsel %vm311, %v407, 0.0
    %v504 = vsel %vm312, %v408, 0.0
    %v505 = vsel %vm313, %v409, 0.0
    %506 = vst [vmem:[#allocation5] sm:$0xff] %v410
    %507 = vst [vmem:[#allocation5 + $0x8] sm:$0xff] %v411
    %508 = vst [vmem:[#allocation5 + $0x10] sm:$0xff] %v412
    %509 = vst [vmem:[#allocation5 + $0x18] sm:$0xff] %v413
    %510 = vst [vmem:[#allocation5 + $0x20] sm:$0xff] %v414
    %511 = vst [vmem:[#allocation5 + $0x28] sm:$0xff] %v415
    %512 = vst [vmem:[#allocation5 + $0x30] sm:$0xff] %v416
    %513 = vst [vmem:[#allocation5 + $0x38] sm:$0xff] %v417
    %514 = vst [vmem:[#allocation5 + $0x40] sm:$0xff] %v418
    %515 = vst [vmem:[#allocation5 + $0x48] sm:$0xff] %v419
    %516 = vst [vmem:[#allocation5 + $0x50] sm:$0xff] %v420
    %517 = vst [vmem:[#allocation5 + $0x58] sm:$0xff] %v421
    %518 = vst [vmem:[#allocation5 + $0x60] sm:$0xff] %v422
    %519 = vst [vmem:[#allocation5 + $0x68] sm:$0xff] %v423
    %520 = vst [vmem:[#allocation5 + $0x70] sm:$0xff] %v424
    %521 = vst [vmem:[#allocation5 + $0x78] sm:$0xff] %v425
    %522 = vst [vmem:[#allocation5 + $0x80] sm:$0xff] %v426
    %523 = vst [vmem:[#allocation5 + $0x88] sm:$0xff] %v427
    %524 = vst [vmem:[#allocation5 + $0x90] sm:$0xff] %v428
    %525 = vst [vmem:[#allocation5 + $0x98] sm:$0xff] %v429
    %526 = vst [vmem:[#allocation5 + $0xa0] sm:$0xff] %v430
    %527 = vst [vmem:[#allocation5 + $0xa8] sm:$0xff] %v431
    %528 = vst [vmem:[#allocation5 + $0xb0] sm:$0xff] %v432
    %529 = vst [vmem:[#allocation5 + $0xb8] sm:$0xff] %v433
    %530 = vst [vmem:[#allocation5 + $0xc0] sm:$0xff] %v434
    %531 = vst [vmem:[#allocation5 + $0xc8] sm:$0xff] %v435
    %532 = vst [vmem:[#allocation5 + $0xd0] sm:$0xff] %v436
    %533 = vst [vmem:[#allocation5 + $0xd8] sm:$0xff] %v437
    %534 = vst [vmem:[#allocation5 + $0xe0] sm:$0xff] %v438
    %535 = vst [vmem:[#allocation5 + $0xe8] sm:$0xff] %v439
    %536 = vst [vmem:[#allocation5 + $0xf0] sm:$0xff] %v440
    %537 = vst [vmem:[#allocation5 + $0xf8] sm:$0xff] %v441
    %538 = vst [vmem:[#allocation5 + $0x100] sm:$0xff] %v442
    %539 = vst [vmem:[#allocation5 + $0x108] sm:$0xff] %v443
    %540 = vst [vmem:[#allocation5 + $0x110] sm:$0xff] %v444
    %541 = vst [vmem:[#allocation5 + $0x118] sm:$0xff] %v445
    %542 = vst [vmem:[#allocation5 + $0x120] sm:$0xff] %v446
    %543 = vst [vmem:[#allocation5 + $0x128] sm:$0xff] %v447
    %544 = vst [vmem:[#allocation5 + $0x130] sm:$0xff] %v448
    %545 = vst [vmem:[#allocation5 + $0x138] sm:$0xff] %v449
    %546 = vst [vmem:[#allocation5 + $0x140] sm:$0xff] %v450
    %547 = vst [vmem:[#allocation5 + $0x148] sm:$0xff] %v451
    %548 = vst [vmem:[#allocation5 + $0x150] sm:$0xff] %v452
    %549 = vst [vmem:[#allocation5 + $0x158] sm:$0xff] %v453
    %550 = vst [vmem:[#allocation5 + $0x160] sm:$0xff] %v454
    %551 = vst [vmem:[#allocation5 + $0x168] sm:$0xff] %v455
    %552 = vst [vmem:[#allocation5 + $0x170] sm:$0xff] %v456
    %553 = vst [vmem:[#allocation5 + $0x178] sm:$0xff] %v457
    %554 = vst [vmem:[#allocation5 + $0x180] sm:$0xff] %v458
    %555 = vst [vmem:[#allocation5 + $0x188] sm:$0xff] %v459
    %556 = vst [vmem:[#allocation5 + $0x190] sm:$0xff] %v460
    %557 = vst [vmem:[#allocation5 + $0x198] sm:$0xff] %v461
    %558 = vst [vmem:[#allocation5 + $0x1a0] sm:$0xff] %v462
    %559 = vst [vmem:[#allocation5 + $0x1a8] sm:$0xff] %v463
    %560 = vst [vmem:[#allocation5 + $0x1b0] sm:$0xff] %v464
    %561 = vst [vmem:[#allocation5 + $0x1b8] sm:$0xff] %v465
    %562 = vst [vmem:[#allocation5 + $0x1c0] sm:$0xff] %v466
    %563 = vst [vmem:[#allocation5 + $0x1c8] sm:$0xff] %v467
    %564 = vst [vmem:[#allocation5 + $0x1d0] sm:$0xff] %v468
    %565 = vst [vmem:[#allocation5 + $0x1d8] sm:$0xff] %v469
    %566 = vst [vmem:[#allocation5 + $0x1e0] sm:$0xff] %v470
    %567 = vst [vmem:[#allocation5 + $0x1e8] sm:$0xff] %v471
    %568 = vst [vmem:[#allocation5 + $0x1f0] sm:$0xff] %v472
    %569 = vst [vmem:[#allocation5 + $0x1f8] sm:$0xff] %v473
    %570 = vst [vmem:[#allocation5 + $0x200] sm:$0xff] %v474
    %571 = vst [vmem:[#allocation5 + $0x208] sm:$0xff] %v475
    %572 = vst [vmem:[#allocation5 + $0x210] sm:$0xff] %v476
    %573 = vst [vmem:[#allocation5 + $0x218] sm:$0xff] %v477
    %574 = vst [vmem:[#allocation5 + $0x220] sm:$0xff] %v478
    %575 = vst [vmem:[#allocation5 + $0x228] sm:$0xff] %v479
    %576 = vst [vmem:[#allocation5 + $0x230] sm:$0xff] %v480
    %577 = vst [vmem:[#allocation5 + $0x238] sm:$0xff] %v481
    %578 = vst [vmem:[#allocation5 + $0x240] sm:$0xff] %v482
    %579 = vst [vmem:[#allocation5 + $0x248] sm:$0xff] %v483
    %580 = vst [vmem:[#allocation5 + $0x250] sm:$0xff] %v484
    %581 = vst [vmem:[#allocation5 + $0x258] sm:$0xff] %v485
    %582 = vst [vmem:[#allocation5 + $0x260] sm:$0xff] %v486
    %583 = vst [vmem:[#allocation5 + $0x268] sm:$0xff] %v487
    %584 = vst [vmem:[#allocation5 + $0x270] sm:$0xff] %v488
    %585 = vst [vmem:[#allocation5 + $0x278] sm:$0xff] %v489
    %586 = vst [vmem:[#allocation5 + $0x280] sm:$0xff] %v490
    %587 = vst [vmem:[#allocation5 + $0x288] sm:$0xff] %v491
    %588 = vst [vmem:[#allocation5 + $0x290] sm:$0xff] %v492
    %589 = vst [vmem:[#allocation5 + $0x298] sm:$0xff] %v493
    %590 = vst [vmem:[#allocation5 + $0x2a0] sm:$0xff] %v494
    %591 = vst [vmem:[#allocation5 + $0x2a8] sm:$0xff] %v495
    %592 = vst [vmem:[#allocation5 + $0x2b0] sm:$0xff] %v496
    %593 = vst [vmem:[#allocation5 + $0x2b8] sm:$0xff] %v497
    %594 = vst [vmem:[#allocation5 + $0x2c0] sm:$0xff] %v498
    %595 = vst [vmem:[#allocation5 + $0x2c8] sm:$0xff] %v499
    %596 = vst [vmem:[#allocation5 + $0x2d0] sm:$0xff] %v500
    %597 = vst [vmem:[#allocation5 + $0x2d8] sm:$0xff] %v501
    %598 = vst [vmem:[#allocation5 + $0x2e0] sm:$0xff] %v502
    %599 = vst [vmem:[#allocation5 + $0x2e8] sm:$0xff] %v503
    %600 = vst [vmem:[#allocation5 + $0x2f0] sm:$0xff] %v504
    %601 = vst [vmem:[#allocation5 + $0x2f8] sm:$0xff] %v505
    // Predicated region
    $region14: #{tpu_custom_call.1} parent=1 // pred_check
      _
    $region15: #{tpu_custom_call.1} parent=1 // pred_check_branch
      %603 = sbr.rel (0) target = $region17
    $region16: #{tpu_custom_call.1} parent=1 // pred_region
      %s605 = ssub.s32 12288, 12288
      %606 = vsyncadd [#allocation4], %s605
      %s607 = sshll.u32 [#allocation5], 4
      %s608 = int_to_ptr.vmem [resolvable:$true] %s607
      %613 = dma.vmem_to_hbm [thread:$0]  %s608, 12288, %s2, [#allocation4], 256, 256, 16
    $region17: #{tpu_custom_call.1} parent=1 // pred_fallthru
      _
    // Predicated region
    $region18: #{tpu_custom_call.1} parent=1 // pred_check
      _
    $region19: #{tpu_custom_call.1} parent=1 // pred_check_branch
      %615 = sbr.rel (0) target = $region21
    $region20: #{tpu_custom_call.1} parent=1 // pred_region
      %616 = dma.done [#allocation4], 12288
    $region21: #{tpu_custom_call.1} parent=1 // pred_fallthru
      _
    %617 = vsyncpa [#allocation3], 1
    %618 = vsyncpa [#allocation4], 1

</llo_original>
